<compile_context>
chip_gen: v6e
topology: v6e:2x2x1
jax: 0.10.0
libtpu: 0.0.40
codegen_flags: <defaults>
</compile_context>

<pallas_src>
import jax
import jax.numpy as jnp
from jax.experimental import pallas as pl
from jax.experimental.pallas import tpu as pltpu


def _linear_model_kernel(w1_ref, b1_ref, w2_ref, b2_ref, x1_ref, x2_ref, out_ref):
    """VPU-only fused MLP block.

    w1_ref: (F, F) SMEM, PyTorch (out, in) layout, pre-scaled by 2.0.
    b1_ref: (F,)   SMEM.
    w2_ref: (F, F) SMEM, PyTorch (out, in) layout.
    b2_ref: (F,)   SMEM.
    x1_ref, x2_ref, out_ref: (F, TB) VMEM, batch on the lane axis (lane-dense).
    """
    F = x1_ref.shape[0]
    x1 = x1_ref[...]          # (F, TB)
    x2 = x2_ref[...]          # (F, TB)

    # Layer 1 + ReLU: h_j = relu(sum_k (2*W1)[j, k] * x1_k + b1_j)
    # Unrolled K=4 scalar*vector MACs on the VPU (no MXU push/pop latency).
    h = []
    for j in range(F):
        acc = x1[0:1, :] * w1_ref[j, 0]
        for k in range(1, F):
            acc = acc + x1[k:k + 1, :] * w1_ref[j, k]
        h.append(jnp.maximum(acc + b1_ref[j], 0.0))

    # Layer 2 + residual: out_j = sum_k W2[j, k] * h_k + b2_j + x2_j
    rows = []
    for j in range(F):
        acc = h[0] * w2_ref[j, 0]
        for k in range(1, F):
            acc = acc + h[k] * w2_ref[j, k]
        rows.append(acc + b2_ref[j])

    out_ref[...] = jnp.concatenate(rows, axis=0) + x2


def linear_model_forward(x1, x2, w1, b1, w2, b2):
    """x1, x2: (B, F) f32. w1, w2: (F, F) PyTorch layout (out, in). b1, b2: (F,)."""
    B, F = x1.shape
    assert x2.shape == (B, F)

    x1 = jnp.asarray(x1, jnp.float32)
    x2 = jnp.asarray(x2, jnp.float32)
    # Fold the x1*2 scale into the first-layer weights (exact in f32).
    w1_2x = jnp.asarray(w1, jnp.float32) * 2.0
    w2 = jnp.asarray(w2, jnp.float32)
    b1 = jnp.asarray(b1, jnp.float32)
    b2 = jnp.asarray(b2, jnp.float32)

    # Lane-dense layout: batch on lanes (last axis), features on sublanes.
    x1_t = x1.T               # (F, B)
    x2_t = x2.T               # (F, B)

    # Batch tile along the lane axis.  Whole batch in one block when small;
    # 1024-wide lane tiles (multiple of 128) when large.
    if B <= 1024:
        tb = B
    else:
        tb = 1024
        assert B % tb == 0, "pad the batch to a multiple of 1024 for large B"
    grid = (pl.cdiv(B, tb),)

    smem_spec = pl.BlockSpec(memory_space=pltpu.MemorySpace.SMEM)
    data_spec = pl.BlockSpec((F, tb), lambda i: (0, i))

    out_t = pl.pallas_call(
        _linear_model_kernel,
        out_shape=jax.ShapeDtypeStruct((F, B), jnp.float32),
        grid=grid,
        in_specs=[
            smem_spec,   # w1 (pre-scaled by 2)
            smem_spec,   # b1
            smem_spec,   # w2
            smem_spec,   # b2
            data_spec,   # x1^T
            data_spec,   # x2^T
        ],
        out_specs=data_spec,
        # Write the result in place over x2^T: removes one HBM allocation and
        # halves writeback-side pressure in this 3-stream mem-bound kernel.
        input_output_aliases={5: 0},
        compiler_params=pltpu.CompilerParams(
            dimension_semantics=("parallel",),
        ),
    )(w1_2x, b1, w2, b2, x1_t, x2_t)

    return out_t.T            # back to (B, F)


def _reference(x1, x2, w1, b1, w2, b2):
    h = (x1 * 2.0) @ w1.T + b1
    h = jnp.maximum(h, 0.0)
    y = h @ w2.T + b2
    return y + x2


if __name__ == "__main__":
    key = jax.random.PRNGKey(0)
    k_x1, k_x2, k_w1, k_b1, k_w2, k_b2 = jax.random.split(key, 6)

    B, F = 8, 4  # batch=8, features=4 (Linear(4, 4))

    x1 = jax.random.normal(k_x1, (B, F), dtype=jnp.float32)
    x2 = jax.random.normal(k_x2, (B, F), dtype=jnp.float32)

    # Deterministic parameter init (PyTorch-style uniform bound 1/sqrt(fan_in)).
    bound = 1.0 / jnp.sqrt(jnp.float32(F))
    w1 = jax.random.uniform(k_w1, (F, F), jnp.float32, -bound, bound)  # (out, in)
    b1 = jax.random.uniform(k_b1, (F,), jnp.float32, -bound, bound)
    w2 = jax.random.uniform(k_w2, (F, F), jnp.float32, -bound, bound)  # (out, in)
    b2 = jax.random.uniform(k_b2, (F,), jnp.float32, -bound, bound)

    fwd = jax.jit(linear_model_forward)
    out = fwd(x1, x2, w1, b1, w2, b2)
    jax.block_until_ready(out)

    ref = _reference(x1, x2, w1, b1, w2, b2)
    assert out.shape == (B, F)
    assert jnp.allclose(out, ref, atol=1e-5, rtol=1e-5), "mismatch vs reference"

    print("KERNEL_OK")
</pallas_src>

<mosaic_0001>
module attributes {stable_mosaic.version = 11 : i64} {
  func.func @_linear_model_kernel(%arg0: i32, %arg1: memref<4x4xf32, #tpu.memory_space<smem>>, %arg2: memref<4xf32, #tpu.memory_space<smem>>, %arg3: memref<4x4xf32, #tpu.memory_space<smem>>, %arg4: memref<4xf32, #tpu.memory_space<smem>>, %arg5: memref<4x8xf32, #tpu.memory_space<vmem>>, %arg6: memref<4x8xf32, #tpu.memory_space<vmem>>, %arg7: memref<4x8xf32, #tpu.memory_space<vmem>>) attributes {dimension_semantics = [#tpu.dimension_semantics<parallel>], iteration_bounds = array<i64: 1>, scalar_prefetch = 0 : i64, scratch_operands = 0 : i64, tpu.core_type = #tpu.core_type<tc>, window_params = [{transform_indices = @transform_0, window_bounds = array<i64: 4, 4>}, {transform_indices = @transform_1, window_bounds = array<i64: 4>}, {transform_indices = @transform_2, window_bounds = array<i64: 4, 4>}, {transform_indices = @transform_3, window_bounds = array<i64: 4>}, {transform_indices = @transform_4, window_bounds = array<i64: 4, 8>}, {transform_indices = @transform_5, window_bounds = array<i64: 4, 8>}, {transform_indices = @transform_6, window_bounds = array<i64: 4, 8>}]} {
    %c0 = arith.constant 0 : index
    %c0_0 = arith.constant 0 : index
    %0 = vector.load %arg5[%c0, %c0_0] : memref<4x8xf32, #tpu.memory_space<vmem>>, vector<4x8xf32>
    %c0_1 = arith.constant 0 : index
    %c0_2 = arith.constant 0 : index
    %1 = vector.load %arg6[%c0_1, %c0_2] : memref<4x8xf32, #tpu.memory_space<vmem>>, vector<4x8xf32>
    %2 = vector.extract_strided_slice %0 {offsets = [0, 0], sizes = [1, 8], strides = [1, 1]} : vector<4x8xf32> to vector<1x8xf32>
    %c0_3 = arith.constant 0 : index
    %c0_4 = arith.constant 0 : index
    %3 = memref.load %arg1[%c0_3, %c0_4] : memref<4x4xf32, #tpu.memory_space<smem>>
    %4 = vector.broadcast %3 : f32 to vector<1x8xf32>
    %5 = arith.mulf %2, %4 : vector<1x8xf32>
    %6 = vector.extract_strided_slice %0 {offsets = [1, 0], sizes = [1, 8], strides = [1, 1]} : vector<4x8xf32> to vector<1x8xf32>
    %c0_5 = arith.constant 0 : index
    %c1 = arith.constant 1 : index
    %7 = memref.load %arg1[%c0_5, %c1] : memref<4x4xf32, #tpu.memory_space<smem>>
    %8 = vector.broadcast %7 : f32 to vector<1x8xf32>
    %9 = arith.mulf %6, %8 : vector<1x8xf32>
    %10 = arith.addf %5, %9 : vector<1x8xf32>
    %11 = vector.extract_strided_slice %0 {offsets = [2, 0], sizes = [1, 8], strides = [1, 1]} : vector<4x8xf32> to vector<1x8xf32>
    %c0_6 = arith.constant 0 : index
    %c2 = arith.constant 2 : index
    %12 = memref.load %arg1[%c0_6, %c2] : memref<4x4xf32, #tpu.memory_space<smem>>
    %13 = vector.broadcast %12 : f32 to vector<1x8xf32>
    %14 = arith.mulf %11, %13 : vector<1x8xf32>
    %15 = arith.addf %10, %14 : vector<1x8xf32>
    %16 = vector.extract_strided_slice %0 {offsets = [3, 0], sizes = [1, 8], strides = [1, 1]} : vector<4x8xf32> to vector<1x8xf32>
    %c0_7 = arith.constant 0 : index
    %c3 = arith.constant 3 : index
    %17 = memref.load %arg1[%c0_7, %c3] : memref<4x4xf32, #tpu.memory_space<smem>>
    %18 = vector.broadcast %17 : f32 to vector<1x8xf32>
    %19 = arith.mulf %16, %18 : vector<1x8xf32>
    %20 = arith.addf %15, %19 : vector<1x8xf32>
    %c0_8 = arith.constant 0 : index
    %21 = memref.load %arg2[%c0_8] : memref<4xf32, #tpu.memory_space<smem>>
    %22 = vector.broadcast %21 : f32 to vector<1x8xf32>
    %23 = arith.addf %20, %22 : vector<1x8xf32>
    %cst = arith.constant 0.000000e+00 : f32
    %24 = vector.broadcast %cst : f32 to vector<1x8xf32>
    %25 = arith.maximumf %23, %24 : vector<1x8xf32>
    %26 = vector.extract_strided_slice %0 {offsets = [0, 0], sizes = [1, 8], strides = [1, 1]} : vector<4x8xf32> to vector<1x8xf32>
    %c1_9 = arith.constant 1 : index
    %c0_10 = arith.constant 0 : index
    %27 = memref.load %arg1[%c1_9, %c0_10] : memref<4x4xf32, #tpu.memory_space<smem>>
    %28 = vector.broadcast %27 : f32 to vector<1x8xf32>
    %29 = arith.mulf %26, %28 : vector<1x8xf32>
    %30 = vector.extract_strided_slice %0 {offsets = [1, 0], sizes = [1, 8], strides = [1, 1]} : vector<4x8xf32> to vector<1x8xf32>
    %c1_11 = arith.constant 1 : index
    %c1_12 = arith.constant 1 : index
    %31 = memref.load %arg1[%c1_11, %c1_12] : memref<4x4xf32, #tpu.memory_space<smem>>
    %32 = vector.broadcast %31 : f32 to vector<1x8xf32>
    %33 = arith.mulf %30, %32 : vector<1x8xf32>
    %34 = arith.addf %29, %33 : vector<1x8xf32>
    %35 = vector.extract_strided_slice %0 {offsets = [2, 0], sizes = [1, 8], strides = [1, 1]} : vector<4x8xf32> to vector<1x8xf32>
    %c1_13 = arith.constant 1 : index
    %c2_14 = arith.constant 2 : index
    %36 = memref.load %arg1[%c1_13, %c2_14] : memref<4x4xf32, #tpu.memory_space<smem>>
    %37 = vector.broadcast %36 : f32 to vector<1x8xf32>
    %38 = arith.mulf %35, %37 : vector<1x8xf32>
    %39 = arith.addf %34, %38 : vector<1x8xf32>
    %40 = vector.extract_strided_slice %0 {offsets = [3, 0], sizes = [1, 8], strides = [1, 1]} : vector<4x8xf32> to vector<1x8xf32>
    %c1_15 = arith.constant 1 : index
    %c3_16 = arith.constant 3 : index
    %41 = memref.load %arg1[%c1_15, %c3_16] : memref<4x4xf32, #tpu.memory_space<smem>>
    %42 = vector.broadcast %41 : f32 to vector<1x8xf32>
    %43 = arith.mulf %40, %42 : vector<1x8xf32>
    %44 = arith.addf %39, %43 : vector<1x8xf32>
    %c1_17 = arith.constant 1 : index
    %45 = memref.load %arg2[%c1_17] : memref<4xf32, #tpu.memory_space<smem>>
    %46 = vector.broadcast %45 : f32 to vector<1x8xf32>
    %47 = arith.addf %44, %46 : vector<1x8xf32>
    %cst_18 = arith.constant 0.000000e+00 : f32
    %48 = vector.broadcast %cst_18 : f32 to vector<1x8xf32>
    %49 = arith.maximumf %47, %48 : vector<1x8xf32>
    %50 = vector.extract_strided_slice %0 {offsets = [0, 0], sizes = [1, 8], strides = [1, 1]} : vector<4x8xf32> to vector<1x8xf32>
    %c2_19 = arith.constant 2 : index
    %c0_20 = arith.constant 0 : index
    %51 = memref.load %arg1[%c2_19, %c0_20] : memref<4x4xf32, #tpu.memory_space<smem>>
    %52 = vector.broadcast %51 : f32 to vector<1x8xf32>
    %53 = arith.mulf %50, %52 : vector<1x8xf32>
    %54 = vector.extract_strided_slice %0 {offsets = [1, 0], sizes = [1, 8], strides = [1, 1]} : vector<4x8xf32> to vector<1x8xf32>
    %c2_21 = arith.constant 2 : index
    %c1_22 = arith.constant 1 : index
    %55 = memref.load %arg1[%c2_21, %c1_22] : memref<4x4xf32, #tpu.memory_space<smem>>
    %56 = vector.broadcast %55 : f32 to vector<1x8xf32>
    %57 = arith.mulf %54, %56 : vector<1x8xf32>
    %58 = arith.addf %53, %57 : vector<1x8xf32>
    %59 = vector.extract_strided_slice %0 {offsets = [2, 0], sizes = [1, 8], strides = [1, 1]} : vector<4x8xf32> to vector<1x8xf32>
    %c2_23 = arith.constant 2 : index
    %c2_24 = arith.constant 2 : index
    %60 = memref.load %arg1[%c2_23, %c2_24] : memref<4x4xf32, #tpu.memory_space<smem>>
    %61 = vector.broadcast %60 : f32 to vector<1x8xf32>
    %62 = arith.mulf %59, %61 : vector<1x8xf32>
    %63 = arith.addf %58, %62 : vector<1x8xf32>
    %64 = vector.extract_strided_slice %0 {offsets = [3, 0], sizes = [1, 8], strides = [1, 1]} : vector<4x8xf32> to vector<1x8xf32>
    %c2_25 = arith.constant 2 : index
    %c3_26 = arith.constant 3 : index
    %65 = memref.load %arg1[%c2_25, %c3_26] : memref<4x4xf32, #tpu.memory_space<smem>>
    %66 = vector.broadcast %65 : f32 to vector<1x8xf32>
    %67 = arith.mulf %64, %66 : vector<1x8xf32>
    %68 = arith.addf %63, %67 : vector<1x8xf32>
    %c2_27 = arith.constant 2 : index
    %69 = memref.load %arg2[%c2_27] : memref<4xf32, #tpu.memory_space<smem>>
    %70 = vector.broadcast %69 : f32 to vector<1x8xf32>
    %71 = arith.addf %68, %70 : vector<1x8xf32>
    %cst_28 = arith.constant 0.000000e+00 : f32
    %72 = vector.broadcast %cst_28 : f32 to vector<1x8xf32>
    %73 = arith.maximumf %71, %72 : vector<1x8xf32>
    %74 = vector.extract_strided_slice %0 {offsets = [0, 0], sizes = [1, 8], strides = [1, 1]} : vector<4x8xf32> to vector<1x8xf32>
    %c3_29 = arith.constant 3 : index
    %c0_30 = arith.constant 0 : index
    %75 = memref.load %arg1[%c3_29, %c0_30] : memref<4x4xf32, #tpu.memory_space<smem>>
    %76 = vector.broadcast %75 : f32 to vector<1x8xf32>
    %77 = arith.mulf %74, %76 : vector<1x8xf32>
    %78 = vector.extract_strided_slice %0 {offsets = [1, 0], sizes = [1, 8], strides = [1, 1]} : vector<4x8xf32> to vector<1x8xf32>
    %c3_31 = arith.constant 3 : index
    %c1_32 = arith.constant 1 : index
    %79 = memref.load %arg1[%c3_31, %c1_32] : memref<4x4xf32, #tpu.memory_space<smem>>
    %80 = vector.broadcast %79 : f32 to vector<1x8xf32>
    %81 = arith.mulf %78, %80 : vector<1x8xf32>
    %82 = arith.addf %77, %81 : vector<1x8xf32>
    %83 = vector.extract_strided_slice %0 {offsets = [2, 0], sizes = [1, 8], strides = [1, 1]} : vector<4x8xf32> to vector<1x8xf32>
    %c3_33 = arith.constant 3 : index
    %c2_34 = arith.constant 2 : index
    %84 = memref.load %arg1[%c3_33, %c2_34] : memref<4x4xf32, #tpu.memory_space<smem>>
    %85 = vector.broadcast %84 : f32 to vector<1x8xf32>
    %86 = arith.mulf %83, %85 : vector<1x8xf32>
    %87 = arith.addf %82, %86 : vector<1x8xf32>
    %88 = vector.extract_strided_slice %0 {offsets = [3, 0], sizes = [1, 8], strides = [1, 1]} : vector<4x8xf32> to vector<1x8xf32>
    %c3_35 = arith.constant 3 : index
    %c3_36 = arith.constant 3 : index
    %89 = memref.load %arg1[%c3_35, %c3_36] : memref<4x4xf32, #tpu.memory_space<smem>>
    %90 = vector.broadcast %89 : f32 to vector<1x8xf32>
    %91 = arith.mulf %88, %90 : vector<1x8xf32>
    %92 = arith.addf %87, %91 : vector<1x8xf32>
    %c3_37 = arith.constant 3 : index
    %93 = memref.load %arg2[%c3_37] : memref<4xf32, #tpu.memory_space<smem>>
    %94 = vector.broadcast %93 : f32 to vector<1x8xf32>
    %95 = arith.addf %92, %94 : vector<1x8xf32>
    %cst_38 = arith.constant 0.000000e+00 : f32
    %96 = vector.broadcast %cst_38 : f32 to vector<1x8xf32>
    %97 = arith.maximumf %95, %96 : vector<1x8xf32>
    %c0_39 = arith.constant 0 : index
    %c0_40 = arith.constant 0 : index
    %98 = memref.load %arg3[%c0_39, %c0_40] : memref<4x4xf32, #tpu.memory_space<smem>>
    %99 = vector.broadcast %98 : f32 to vector<1x8xf32>
    %100 = arith.mulf %25, %99 : vector<1x8xf32>
    %c0_41 = arith.constant 0 : index
    %c1_42 = arith.constant 1 : index
    %101 = memref.load %arg3[%c0_41, %c1_42] : memref<4x4xf32, #tpu.memory_space<smem>>
    %102 = vector.broadcast %101 : f32 to vector<1x8xf32>
    %103 = arith.mulf %49, %102 : vector<1x8xf32>
    %104 = arith.addf %100, %103 : vector<1x8xf32>
    %c0_43 = arith.constant 0 : index
    %c2_44 = arith.constant 2 : index
    %105 = memref.load %arg3[%c0_43, %c2_44] : memref<4x4xf32, #tpu.memory_space<smem>>
    %106 = vector.broadcast %105 : f32 to vector<1x8xf32>
    %107 = arith.mulf %73, %106 : vector<1x8xf32>
    %108 = arith.addf %104, %107 : vector<1x8xf32>
    %c0_45 = arith.constant 0 : index
    %c3_46 = arith.constant 3 : index
    %109 = memref.load %arg3[%c0_45, %c3_46] : memref<4x4xf32, #tpu.memory_space<smem>>
    %110 = vector.broadcast %109 : f32 to vector<1x8xf32>
    %111 = arith.mulf %97, %110 : vector<1x8xf32>
    %112 = arith.addf %108, %111 : vector<1x8xf32>
    %c0_47 = arith.constant 0 : index
    %113 = memref.load %arg4[%c0_47] : memref<4xf32, #tpu.memory_space<smem>>
    %114 = vector.broadcast %113 : f32 to vector<1x8xf32>
    %115 = arith.addf %112, %114 : vector<1x8xf32>
    %c1_48 = arith.constant 1 : index
    %c0_49 = arith.constant 0 : index
    %116 = memref.load %arg3[%c1_48, %c0_49] : memref<4x4xf32, #tpu.memory_space<smem>>
    %117 = vector.broadcast %116 : f32 to vector<1x8xf32>
    %118 = arith.mulf %25, %117 : vector<1x8xf32>
    %c1_50 = arith.constant 1 : index
    %c1_51 = arith.constant 1 : index
    %119 = memref.load %arg3[%c1_50, %c1_51] : memref<4x4xf32, #tpu.memory_space<smem>>
    %120 = vector.broadcast %119 : f32 to vector<1x8xf32>
    %121 = arith.mulf %49, %120 : vector<1x8xf32>
    %122 = arith.addf %118, %121 : vector<1x8xf32>
    %c1_52 = arith.constant 1 : index
    %c2_53 = arith.constant 2 : index
    %123 = memref.load %arg3[%c1_52, %c2_53] : memref<4x4xf32, #tpu.memory_space<smem>>
    %124 = vector.broadcast %123 : f32 to vector<1x8xf32>
    %125 = arith.mulf %73, %124 : vector<1x8xf32>
    %126 = arith.addf %122, %125 : vector<1x8xf32>
    %c1_54 = arith.constant 1 : index
    %c3_55 = arith.constant 3 : index
    %127 = memref.load %arg3[%c1_54, %c3_55] : memref<4x4xf32, #tpu.memory_space<smem>>
    %128 = vector.broadcast %127 : f32 to vector<1x8xf32>
    %129 = arith.mulf %97, %128 : vector<1x8xf32>
    %130 = arith.addf %126, %129 : vector<1x8xf32>
    %c1_56 = arith.constant 1 : index
    %131 = memref.load %arg4[%c1_56] : memref<4xf32, #tpu.memory_space<smem>>
    %132 = vector.broadcast %131 : f32 to vector<1x8xf32>
    %133 = arith.addf %130, %132 : vector<1x8xf32>
    %c2_57 = arith.constant 2 : index
    %c0_58 = arith.constant 0 : index
    %134 = memref.load %arg3[%c2_57, %c0_58] : memref<4x4xf32, #tpu.memory_space<smem>>
    %135 = vector.broadcast %134 : f32 to vector<1x8xf32>
    %136 = arith.mulf %25, %135 : vector<1x8xf32>
    %c2_59 = arith.constant 2 : index
    %c1_60 = arith.constant 1 : index
    %137 = memref.load %arg3[%c2_59, %c1_60] : memref<4x4xf32, #tpu.memory_space<smem>>
    %138 = vector.broadcast %137 : f32 to vector<1x8xf32>
    %139 = arith.mulf %49, %138 : vector<1x8xf32>
    %140 = arith.addf %136, %139 : vector<1x8xf32>
    %c2_61 = arith.constant 2 : index
    %c2_62 = arith.constant 2 : index
    %141 = memref.load %arg3[%c2_61, %c2_62] : memref<4x4xf32, #tpu.memory_space<smem>>
    %142 = vector.broadcast %141 : f32 to vector<1x8xf32>
    %143 = arith.mulf %73, %142 : vector<1x8xf32>
    %144 = arith.addf %140, %143 : vector<1x8xf32>
    %c2_63 = arith.constant 2 : index
    %c3_64 = arith.constant 3 : index
    %145 = memref.load %arg3[%c2_63, %c3_64] : memref<4x4xf32, #tpu.memory_space<smem>>
    %146 = vector.broadcast %145 : f32 to vector<1x8xf32>
    %147 = arith.mulf %97, %146 : vector<1x8xf32>
    %148 = arith.addf %144, %147 : vector<1x8xf32>
    %c2_65 = arith.constant 2 : index
    %149 = memref.load %arg4[%c2_65] : memref<4xf32, #tpu.memory_space<smem>>
    %150 = vector.broadcast %149 : f32 to vector<1x8xf32>
    %151 = arith.addf %148, %150 : vector<1x8xf32>
    %c3_66 = arith.constant 3 : index
    %c0_67 = arith.constant 0 : index
    %152 = memref.load %arg3[%c3_66, %c0_67] : memref<4x4xf32, #tpu.memory_space<smem>>
    %153 = vector.broadcast %152 : f32 to vector<1x8xf32>
    %154 = arith.mulf %25, %153 : vector<1x8xf32>
    %c3_68 = arith.constant 3 : index
    %c1_69 = arith.constant 1 : index
    %155 = memref.load %arg3[%c3_68, %c1_69] : memref<4x4xf32, #tpu.memory_space<smem>>
    %156 = vector.broadcast %155 : f32 to vector<1x8xf32>
    %157 = arith.mulf %49, %156 : vector<1x8xf32>
    %158 = arith.addf %154, %157 : vector<1x8xf32>
    %c3_70 = arith.constant 3 : index
    %c2_71 = arith.constant 2 : index
    %159 = memref.load %arg3[%c3_70, %c2_71] : memref<4x4xf32, #tpu.memory_space<smem>>
    %160 = vector.broadcast %159 : f32 to vector<1x8xf32>
    %161 = arith.mulf %73, %160 : vector<1x8xf32>
    %162 = arith.addf %158, %161 : vector<1x8xf32>
    %c3_72 = arith.constant 3 : index
    %c3_73 = arith.constant 3 : index
    %163 = memref.load %arg3[%c3_72, %c3_73] : memref<4x4xf32, #tpu.memory_space<smem>>
    %164 = vector.broadcast %163 : f32 to vector<1x8xf32>
    %165 = arith.mulf %97, %164 : vector<1x8xf32>
    %166 = arith.addf %162, %165 : vector<1x8xf32>
    %c3_74 = arith.constant 3 : index
    %167 = memref.load %arg4[%c3_74] : memref<4xf32, #tpu.memory_space<smem>>
    %168 = vector.broadcast %167 : f32 to vector<1x8xf32>
    %169 = arith.addf %166, %168 : vector<1x8xf32>
    %170 = tpu.concatenate %115, %133, %151, %169 in 0 : vector<1x8xf32>, vector<1x8xf32>, vector<1x8xf32>, vector<1x8xf32> -> vector<4x8xf32>
    %171 = arith.addf %170, %1 : vector<4x8xf32>
    %c0_75 = arith.constant 0 : index
    %c0_76 = arith.constant 0 : index
    %172 = vector.load %arg7[%c0_75, %c0_76] : memref<4x8xf32, #tpu.memory_space<vmem>>, vector<4x8xf32>
    tpu.vector_store %arg7[%c0_75, %c0_76], %171 {strides = array<i32>} : memref<4x8xf32, #tpu.memory_space<vmem>>, vector<4x8xf32>,
    return
  }
  func.func @transform_0(%arg0: i32) -> (i32, i32) {
    %c0_i32 = arith.constant 0 : i32
    %c0_i32_0 = arith.constant 0 : i32
    %c0_i32_1 = arith.constant 0 : i32
    return %c0_i32, %c0_i32_0 : i32, i32
  }
  func.func @transform_1(%arg0: i32) -> i32 {
    %c0_i32 = arith.constant 0 : i32
    %c0_i32_0 = arith.constant 0 : i32
    return %c0_i32 : i32
  }
  func.func @transform_2(%arg0: i32) -> (i32, i32) {
    %c0_i32 = arith.constant 0 : i32
    %c0_i32_0 = arith.constant 0 : i32
    %c0_i32_1 = arith.constant 0 : i32
    return %c0_i32, %c0_i32_0 : i32, i32
  }
  func.func @transform_3(%arg0: i32) -> i32 {
    %c0_i32 = arith.constant 0 : i32
    %c0_i32_0 = arith.constant 0 : i32
    return %c0_i32 : i32
  }
  func.func @transform_4(%arg0: i32) -> (i32, i32) {
    %c0_i32 = arith.constant 0 : i32
    %c0_i32_0 = arith.constant 0 : i32
    return %c0_i32, %arg0 : i32, i32
  }
  func.func @transform_5(%arg0: i32) -> (i32, i32) {
    %c0_i32 = arith.constant 0 : i32
    %c0_i32_0 = arith.constant 0 : i32
    return %c0_i32, %arg0 : i32, i32
  }
  func.func @transform_6(%arg0: i32) -> (i32, i32) {
    %c0_i32 = arith.constant 0 : i32
    %c0_i32_0 = arith.constant 0 : i32
    return %c0_i32, %arg0 : i32, i32
  }
}

</mosaic_0001>

<llo_original>
// kernel: linear_model_forward.1
$region0: #{linear_model_forward.1}
  #allocation0 [shape = 'u32[]', space=smem, size = 0x4, offset = 0x4, fixed_abs, tag = 'smem constant byte address 0x4 - core index']
  #allocation1 [shape = 'u32[144,128]{1,0:T(1,128)}', space=vmem, size = 0x12000, scoped, tag = 'internal scratch']
  %s0 = inlined_call_operand.vmem [shape: f32[4,4], index: 0, kind: input, shape index: {}]
  %s1 = inlined_call_operand.vmem [shape: f32[4], index: 1, kind: input, shape index: {}]
  %s2 = inlined_call_operand.vmem [shape: f32[4,4], index: 2, kind: input, shape index: {}]
  %s3 = inlined_call_operand.vmem [shape: f32[4], index: 3, kind: input, shape index: {}]
  %s4 = inlined_call_operand.vmem [shape: f32[4,8], index: 4, kind: input, shape index: {}]
  %s5 = inlined_call_operand.vmem [shape: f32[4,8], index: 5, kind: input, shape index: {}, may-alias: {5,6}]
  %s6 = inlined_call_operand.vmem [shape: f32[4,8], index: 6, kind: output, shape index: {}, may-alias: {5,6}]
  %s7 = sld [smem:[#allocation0]]
  $region50: #{linear_model_forward.1} parent=0
    _
  %s9 = ssub.s32 1, %s7
  %s10 = scalar_select 0, %s9, %s7
  $region1: #{linear_model_forward.1} parent=0
    #allocation2 [shape = 'u8[2048]{0}', space=smem, size = 0x800, scoped, tag = 'input window, operand 0, single buffered']
    #allocation3 [shape = 's32[1]{0}', space=sflag, size = 0x4, scoped, tag = 'scoped memory for linear_model_forward.1']
    #allocation4 [shape = 'u8[512]{0}', space=smem, size = 0x200, scoped, tag = 'input window, operand 1, single buffered']
    #allocation5 [shape = 's32[1]{0}', space=sflag, size = 0x4, scoped, tag = 'scoped memory for linear_model_forward.1']
    #allocation6 [shape = 'u8[2048]{0}', space=smem, size = 0x800, scoped, tag = 'input window, operand 2, single buffered']
    #allocation7 [shape = 'u8[512]{0}', space=smem, size = 0x200, scoped, tag = 'input window, operand 3, single buffered']
    #allocation8 [shape = 's32[1]{0}', space=sflag, size = 0x4, scoped, tag = 'scoped memory for linear_model_forward.1']
    %11 = vsyncpa [#allocation3], 0
    %12 = vsyncpa [#allocation5], 0
    %13 = vsyncpa [#allocation8], 0
    // Predicated region
    $region2: #{linear_model_forward.1} parent=1 // pred_check
      _
    $region3: #{linear_model_forward.1} parent=1 // pred_check_branch
      %15 = sbr.rel (0) target = $region5
    $region4: #{linear_model_forward.1} parent=1 // pred_region
      %s17 = ssub.s32 64, 64
      %18 = vsyncadd [#allocation3], %s17
      %s20 = sshll.u32 %s0, 4
      %s21 = int_to_ptr.vmem [resolvable:$true] %s20
      %23 = dma.vmem_to_smem %s21, 64, [#allocation2], [#allocation3]
    $region5: #{linear_model_forward.1} parent=1 // pred_fallthru
      _
    // Predicated region
    $region6: #{linear_model_forward.1} parent=1 // pred_check
      _
    $region7: #{linear_model_forward.1} parent=1 // pred_check_branch
      %25 = sbr.rel (0) target = $region9
    $region8: #{linear_model_forward.1} parent=1 // pred_region
      %s27 = ssub.s32 16, 16
      %28 = vsyncadd [#allocation5], %s27
      %s30 = sshll.u32 %s1, 4
      %s31 = int_to_ptr.vmem [resolvable:$true] %s30
      %33 = dma.vmem_to_smem %s31, 16, [#allocation4], [#allocation5]
    $region9: #{linear_model_forward.1} parent=1 // pred_fallthru
      _
    // Predicated region
    $region10: #{linear_model_forward.1} parent=1 // pred_check
      _
    $region11: #{linear_model_forward.1} parent=1 // pred_check_branch
      %35 = sbr.rel (0) target = $region13
    $region12: #{linear_model_forward.1} parent=1 // pred_region
      %s37 = ssub.s32 64, 64
      %38 = vsyncadd [#allocation5], %s37
      %s40 = sshll.u32 %s2, 4
      %s41 = int_to_ptr.vmem [resolvable:$true] %s40
      %43 = dma.vmem_to_smem %s41, 64, [#allocation6], [#allocation5]
    $region13: #{linear_model_forward.1} parent=1 // pred_fallthru
      _
    // Predicated region
    $region14: #{linear_model_forward.1} parent=1 // pred_check
      _
    $region15: #{linear_model_forward.1} parent=1 // pred_check_branch
      %45 = sbr.rel (0) target = $region17
    $region16: #{linear_model_forward.1} parent=1 // pred_region
      %s47 = ssub.s32 16, 16
      %48 = vsyncadd [#allocation8], %s47
      %s50 = sshll.u32 %s3, 4
      %s51 = int_to_ptr.vmem [resolvable:$true] %s50
      %53 = dma.vmem_to_smem %s51, 16, [#allocation7], [#allocation8]
    $region17: #{linear_model_forward.1} parent=1 // pred_fallthru
      _
    // Predicated region
    $region18: #{linear_model_forward.1} parent=1 // pred_check
      _
    $region19: #{linear_model_forward.1} parent=1 // pred_check_branch
      %55 = sbr.rel (0) target = $region21
    $region20: #{linear_model_forward.1} parent=1 // pred_region
      _
    $region21: #{linear_model_forward.1} parent=1 // pred_fallthru
      _
    // Predicated region
    $region22: #{linear_model_forward.1} parent=1 // pred_check
      _
    $region23: #{linear_model_forward.1} parent=1 // pred_check_branch
      %57 = sbr.rel (0) target = $region25
    $region24: #{linear_model_forward.1} parent=1 // pred_region
      _
    $region25: #{linear_model_forward.1} parent=1 // pred_fallthru
      _
    // Predicated region
    $region26: #{linear_model_forward.1} parent=1 // pred_check
      _
    $region27: #{linear_model_forward.1} parent=1 // pred_check_branch
      %59 = sbr.rel (0) target = $region29
    $region28: #{linear_model_forward.1} parent=1 // pred_region
      %60 = dma.done [#allocation3], 64
    $region29: #{linear_model_forward.1} parent=1 // pred_fallthru
      _
    // Predicated region
    $region30: #{linear_model_forward.1} parent=1 // pred_check
      _
    $region31: #{linear_model_forward.1} parent=1 // pred_check_branch
      %62 = sbr.rel (0) target = $region33
    $region32: #{linear_model_forward.1} parent=1 // pred_region
      %63 = dma.done [#allocation5], 16
    $region33: #{linear_model_forward.1} parent=1 // pred_fallthru
      _
    // Predicated region
    $region34: #{linear_model_forward.1} parent=1 // pred_check
      _
    $region35: #{linear_model_forward.1} parent=1 // pred_check_branch
      %65 = sbr.rel (0) target = $region37
    $region36: #{linear_model_forward.1} parent=1 // pred_region
      %66 = dma.done [#allocation5], 64
    $region37: #{linear_model_forward.1} parent=1 // pred_fallthru
      _
    // Predicated region
    $region38: #{linear_model_forward.1} parent=1 // pred_check
      _
    $region39: #{linear_model_forward.1} parent=1 // pred_check_branch
      %68 = sbr.rel (0) target = $region41
    $region40: #{linear_model_forward.1} parent=1 // pred_region
      %69 = dma.done [#allocation8], 16
    $region41: #{linear_model_forward.1} parent=1 // pred_fallthru
      _
    %70 = sfence
    %v71 = vld [vmem:[%s4] sm:$0xf]
    %v72 = vld [vmem:[%s5] sm:$0xf]
    %s73 = sld [smem:[#allocation2]]
    %v74 = vstv %s73
    %v75 = vmul.f32 %v71, %v74
    %s76 = sld [smem:[#allocation2 + $0x1]]
    %v77 = vstv %s76
    %v78 = vmul.f32 %v71, %v77
    %v80 = vrot.slane %v78, 1
    %v82 = vadd.f32 %v75, %v80
    %s83 = sld [smem:[#allocation2 + $0x2]]
    %v84 = vstv %s83
    %v85 = vmul.f32 %v71, %v84
    %v87 = vrot.slane %v85, 2
    %v89 = vadd.f32 %v82, %v87
    %s90 = sld [smem:[#allocation2 + $0x3]]
    %v91 = vstv %s90
    %v92 = vmul.f32 %v71, %v91
    %v94 = vrot.slane %v92, 3
    %v96 = vadd.f32 %v89, %v94
    %s97 = sld [smem:[#allocation4]]
    %v98 = vstv %s97
    %v99 = vadd.f32 %v96, %v98
    %v100 = vmax.f32 %v99, 0.0
    %s101 = sld [smem:[#allocation2 + $0x80]]
    %v102 = vstv %s101
    %v103 = vmul.f32 %v71, %v102
    %s104 = sld [smem:[#allocation2 + $0x81]]
    %v105 = vstv %s104
    %v106 = vmul.f32 %v71, %v105
    %v108 = vrot.slane %v106, 1
    %v110 = vadd.f32 %v103, %v108
    %s111 = sld [smem:[#allocation2 + $0x82]]
    %v112 = vstv %s111
    %v113 = vmul.f32 %v71, %v112
    %v115 = vrot.slane %v113, 2
    %v117 = vadd.f32 %v110, %v115
    %s118 = sld [smem:[#allocation2 + $0x83]]
    %v119 = vstv %s118
    %v120 = vmul.f32 %v71, %v119
    %v122 = vrot.slane %v120, 3
    %v124 = vadd.f32 %v117, %v122
    %s125 = sld [smem:[#allocation4 + $0x1]]
    %v126 = vstv %s125
    %v127 = vadd.f32 %v124, %v126
    %v128 = vmax.f32 %v127, 0.0
    %s129 = sld [smem:[#allocation2 + $0x100]]
    %v130 = vstv %s129
    %v131 = vmul.f32 %v71, %v130
    %s132 = sld [smem:[#allocation2 + $0x101]]
    %v133 = vstv %s132
    %v134 = vmul.f32 %v71, %v133
    %v136 = vrot.slane %v134, 1
    %v138 = vadd.f32 %v131, %v136
    %s139 = sld [smem:[#allocation2 + $0x102]]
    %v140 = vstv %s139
    %v141 = vmul.f32 %v71, %v140
    %v143 = vrot.slane %v141, 2
    %v145 = vadd.f32 %v138, %v143
    %s146 = sld [smem:[#allocation2 + $0x103]]
    %v147 = vstv %s146
    %v148 = vmul.f32 %v71, %v147
    %v150 = vrot.slane %v148, 3
    %v152 = vadd.f32 %v145, %v150
    %s153 = sld [smem:[#allocation4 + $0x2]]
    %v154 = vstv %s153
    %v155 = vadd.f32 %v152, %v154
    %v156 = vmax.f32 %v155, 0.0
    %s157 = sld [smem:[#allocation2 + $0x180]]
    %v158 = vstv %s157
    %v159 = vmul.f32 %v71, %v158
    %s160 = sld [smem:[#allocation2 + $0x181]]
    %v161 = vstv %s160
    %v162 = vmul.f32 %v71, %v161
    %v164 = vrot.slane %v162, 1
    %v166 = vadd.f32 %v159, %v164
    %s167 = sld [smem:[#allocation2 + $0x182]]
    %v168 = vstv %s167
    %v169 = vmul.f32 %v71, %v168
    %v171 = vrot.slane %v169, 2
    %v173 = vadd.f32 %v166, %v171
    %s174 = sld [smem:[#allocation2 + $0x183]]
    %v175 = vstv %s174
    %v176 = vmul.f32 %v71, %v175
    %v178 = vrot.slane %v176, 3
    %v180 = vadd.f32 %v173, %v178
    %s181 = sld [smem:[#allocation4 + $0x3]]
    %v182 = vstv %s181
    %v183 = vadd.f32 %v180, %v182
    %v184 = vmax.f32 %v183, 0.0
    %s185 = sld [smem:[#allocation6]]
    %v186 = vstv %s185
    %v187 = vmul.f32 %v100, %v186
    %s188 = sld [smem:[#allocation6 + $0x1]]
    %v189 = vstv %s188
    %v190 = vmul.f32 %v128, %v189
    %v191 = vadd.f32 %v187, %v190
    %s192 = sld [smem:[#allocation6 + $0x2]]
    %v193 = vstv %s192
    %v194 = vmul.f32 %v156, %v193
    %v195 = vadd.f32 %v191, %v194
    %s196 = sld [smem:[#allocation6 + $0x3]]
    %v197 = vstv %s196
    %v198 = vmul.f32 %v184, %v197
    %v199 = vadd.f32 %v195, %v198
    %s200 = sld [smem:[#allocation7]]
    %v201 = vstv %s200
    %v202 = vadd.f32 %v199, %v201
    %s203 = sld [smem:[#allocation6 + $0x80]]
    %v204 = vstv %s203
    %v205 = vmul.f32 %v100, %v204
    %s206 = sld [smem:[#allocation6 + $0x81]]
    %v207 = vstv %s206
    %v208 = vmul.f32 %v128, %v207
    %v209 = vadd.f32 %v205, %v208
    %s210 = sld [smem:[#allocation6 + $0x82]]
    %v211 = vstv %s210
    %v212 = vmul.f32 %v156, %v211
    %v213 = vadd.f32 %v209, %v212
    %s214 = sld [smem:[#allocation6 + $0x83]]
    %v215 = vstv %s214
    %v216 = vmul.f32 %v184, %v215
    %v217 = vadd.f32 %v213, %v216
    %s218 = sld [smem:[#allocation7 + $0x1]]
    %v219 = vstv %s218
    %v220 = vadd.f32 %v217, %v219
    %s221 = sld [smem:[#allocation6 + $0x100]]
    %v222 = vstv %s221
    %v223 = vmul.f32 %v100, %v222
    %s224 = sld [smem:[#allocation6 + $0x101]]
    %v225 = vstv %s224
    %v226 = vmul.f32 %v128, %v225
    %v227 = vadd.f32 %v223, %v226
    %s228 = sld [smem:[#allocation6 + $0x102]]
    %v229 = vstv %s228
    %v230 = vmul.f32 %v156, %v229
    %v231 = vadd.f32 %v227, %v230
    %s232 = sld [smem:[#allocation6 + $0x103]]
    %v233 = vstv %s232
    %v234 = vmul.f32 %v184, %v233
    %v235 = vadd.f32 %v231, %v234
    %s236 = sld [smem:[#allocation7 + $0x2]]
    %v237 = vstv %s236
    %v238 = vadd.f32 %v235, %v237
    %s239 = sld [smem:[#allocation6 + $0x180]]
    %v240 = vstv %s239
    %v241 = vmul.f32 %v100, %v240
    %s242 = sld [smem:[#allocation6 + $0x181]]
    %v243 = vstv %s242
    %v244 = vmul.f32 %v128, %v243
    %v245 = vadd.f32 %v241, %v244
    %s246 = sld [smem:[#allocation6 + $0x182]]
    %v247 = vstv %s246
    %v248 = vmul.f32 %v156, %v247
    %v249 = vadd.f32 %v245, %v248
    %s250 = sld [smem:[#allocation6 + $0x183]]
    %v251 = vstv %s250
    %v252 = vmul.f32 %v184, %v251
    %v253 = vadd.f32 %v249, %v252
    %s254 = sld [smem:[#allocation7 + $0x3]]
    %v255 = vstv %s254
    %v256 = vadd.f32 %v253, %v255
    %v258 = vrot.slane %v220, 7
    %v261 = vrot.slane %v238, 6
    %v264 = vrot.slane %v256, 5
    %vm266 = vcmask 1040384
    %v267 = vsel %vm266, %v202, %v258
    %vm268 = vcmask 1041408
    %v269 = vsel %vm268, %v267, %v261
    %vm270 = vcmask 1042432
    %v271 = vsel %vm270, %v269, %v264
    %v272 = vadd.f32 %v271, %v72
    %vm273 = vcmask 60416
    %274 = vst.msk [vmem:[%s6] sm:$0xf] %vm273, %v272
    // Predicated region
    $region42: #{linear_model_forward.1} parent=1 // pred_check
      _
    $region43: #{linear_model_forward.1} parent=1 // pred_check_branch
      %276 = sbr.rel (0) target = $region45
    $region44: #{linear_model_forward.1} parent=1 // pred_region
      _
    $region45: #{linear_model_forward.1} parent=1 // pred_fallthru
      _
    // Predicated region
    $region46: #{linear_model_forward.1} parent=1 // pred_check
      _
    $region47: #{linear_model_forward.1} parent=1 // pred_check_branch
      %278 = sbr.rel (0) target = $region49
    $region48: #{linear_model_forward.1} parent=1 // pred_region
      _
    $region49: #{linear_model_forward.1} parent=1 // pred_fallthru
      _
    %279 = vsyncpa [#allocation3], 1
    %280 = vsyncpa [#allocation5], 1
    %281 = vsyncpa [#allocation8], 1

</llo_original>
